<compile_context>
chip_gen: v6e
topology: v6e:2x2x1
jax: 0.10.0
libtpu: 0.0.40
codegen_flags: <defaults>
</compile_context>

<pallas_src>
import functools

import jax
import jax.numpy as jnp
from jax.experimental import pallas as pl
from jax.experimental.pallas import tpu as pltpu

EPS = 1e-5
_TN_HARD_CAP = 128 * 1024   # upper bound on the lane-tile size
_TARGET_TILES = 8           # >=2 tiles for v7x megacore; 8 amortizes pipeline ramp


def _round_up(x, m):
    return (x + m - 1) // m * m


def _vmem_limit_bytes():
    """Per-generation VMEM budget: ~75% of physical, capped at 100 MiB.
    v5e/v6e (128 MiB) -> 96 MiB; v7x (64 MiB) -> 48 MiB; fallback 48 MiB."""
    try:
        cap = int(pltpu.get_tpu_info().vmem_capacity_bytes)
    except Exception:   # query unavailable -> be conservative (v7x-safe)
        cap = 64 << 20
    return min(cap * 3 // 4, 100 << 20)


def _choose_tn(n, c, e, vmem_limit):
    """Lane-tile size: as large as the VMEM budget allows (2-8+ MiB payload per
    grid step), while keeping >= _TARGET_TILES tiles and 128-lane alignment."""
    c_pad = _round_up(max(c, 1), 8)
    e_pad = _round_up(max(e, 1), 8)
    # fp32 bytes per lane of tile: double-buffered input + output tiles, the
    # x^T / y values, and two (E, tn)-sized hidden temporaries (matmul result
    # and relu'd h) that Mosaic materializes in VMEM.
    per_lane = 4 * (6 * c_pad + 2 * e_pad)
    budget = int(vmem_limit * 0.55)
    tn_cap = max(512, budget // per_lane // 128 * 128)
    tn_cap = min(tn_cap, _TN_HARD_CAP)
    tn = min(tn_cap, max(512, _round_up(pl.cdiv(n, _TARGET_TILES), 128)))
    if tn >= n:
        tn = n                  # single full-extent block (any n, no padding)
    return tn


# ---------------- fused (folded-BN) MLP + residual, one pass over x^T -------
def _mlp_feat_kernel(xt_ref, w1_ref, b1_ref, w2_ref, b2_ref, o_ref):
    xt = xt_ref[...]                                                   # (C, tn)
    # h^T = relu(W1' @ x^T + b1')  -- BN stats+affine already folded into W1'/b1'
    h = jnp.dot(w1_ref[...], xt, preferred_element_type=jnp.float32)   # (E, tn)
    h = jnp.maximum(h + b1_ref[...], 0.0)
    # out^T = x^T + W2 @ h^T + b2  (residual on the raw, un-normalized input)
    y = jnp.dot(w2_ref[...], h, preferred_element_type=jnp.float32)    # (C, tn)
    o_ref[...] = xt + y + b2_ref[...]


@functools.partial(jax.jit, static_argnames=("batch_norm",))
def mlp_feat_forward(x, gamma, beta, w1, b1, w2, b2, batch_norm=True):
    """x: (B, T, C) fp32.  PyTorch weight layout: w1 (E, C), b1 (E,),
    w2 (C, E), b2 (C,), gamma/beta (C,).  Returns (B, T, C)."""
    B, T, C = x.shape
    E = w1.shape[0]
    N = B * T

    x2 = x.reshape(N, C)

    # ---- BatchNorm batch statistics (training-mode, biased variance) -------
    # Plain jnp in natural layout (review item): fused XLA streaming passes,
    # two-pass (mean then centered var) for numerical robustness.
    if batch_norm:
        mean = jnp.mean(x2, axis=0)                         # (C,)
        var = jnp.mean(jnp.square(x2 - mean), axis=0)       # (C,)
        scale = gamma * jax.lax.rsqrt(var + EPS)            # (C,)
        shift = beta - mean * scale                         # (C,)
    else:
        scale = jnp.ones((C,), jnp.float32)
        shift = jnp.zeros((C,), jnp.float32)

    # Fold BN into the first Linear:
    #   relu((x*scale + shift) @ W1^T + b1) == relu(x @ (W1*scale)^T + (b1 + W1@shift))
    w1f = w1 * scale[None, :]                               # (E, C)
    b1f = (b1 + w1 @ shift).reshape(E, 1)                   # (E, 1)
    b2c = b2.reshape(C, 1)                                  # (C, 1)

    # Lane-dense layout for the streamed tensor: big N axis on lanes.
    xt = x2.T                                               # (C, N)

    vmem_limit = _vmem_limit_bytes()
    tn = _choose_tn(N, C, E, vmem_limit)
    grid = (pl.cdiv(N, tn),)

    flops = 4 * N * C * E                                   # two matmuls
    bytes_accessed = (2 * N * C + 2 * E * C + E + C) * 4

    out_t = pl.pallas_call(
        _mlp_feat_kernel,
        out_shape=jax.ShapeDtypeStruct((C, N), jnp.float32),
        grid=grid,
        in_specs=[
            pl.BlockSpec((C, tn), lambda i: (0, i)),        # x^T tile (pipelined)
            pl.BlockSpec((E, C), lambda i: (0, 0)),         # W1' (resident)
            pl.BlockSpec((E, 1), lambda i: (0, 0)),         # b1'
            pl.BlockSpec((C, E), lambda i: (0, 0)),         # W2
            pl.BlockSpec((C, 1), lambda i: (0, 0)),         # b2
        ],
        out_specs=pl.BlockSpec((C, tn), lambda i: (0, i)),
        compiler_params=pltpu.CompilerParams(
            dimension_semantics=("parallel",),              # independent tiles
            vmem_limit_bytes=vmem_limit),
        cost_estimate=pl.CostEstimate(
            flops=flops, transcendentals=0, bytes_accessed=bytes_accessed),
    )(xt, w1f, b1f, w2, b2c)

    return out_t.T.reshape(B, T, C)


def init_params(key, in_channels, embed_dim):
    """Synthetic init (PyTorch-Linear-like ranges; gamma/beta randomized so the
    BN affine fold is actually exercised)."""
    k1, k2, k3, k4, k5, k6 = jax.random.split(key, 6)
    lim1 = 1.0 / jnp.sqrt(in_channels)
    lim2 = 1.0 / jnp.sqrt(embed_dim)
    gamma = jax.random.uniform(k5, (in_channels,), jnp.float32, 0.5, 1.5)
    beta = jax.random.uniform(k6, (in_channels,), jnp.float32, -0.5, 0.5)
    # PyTorch layouts: Linear(C, E).weight -> (E, C); Linear(E, C).weight -> (C, E)
    w1 = jax.random.uniform(k1, (embed_dim, in_channels), jnp.float32, -lim1, lim1)
    b1 = jax.random.uniform(k2, (embed_dim,), jnp.float32, -lim1, lim1)
    w2 = jax.random.uniform(k3, (in_channels, embed_dim), jnp.float32, -lim2, lim2)
    b2 = jax.random.uniform(k4, (in_channels,), jnp.float32, -lim2, lim2)
    return gamma, beta, w1, b1, w2, b2


def _reference(x, gamma, beta, w1, b1, w2, b2, batch_norm=True):
    """Pure-JAX reference of the same forward."""
    B, T, C = x.shape
    x2 = x.reshape(B * T, C)
    if batch_norm:
        mean = x2.mean(0, keepdims=True)
        var = ((x2 - mean) ** 2).mean(0, keepdims=True)
        xn = (x2 - mean) / jnp.sqrt(var + EPS) * gamma + beta
    else:
        xn = x2
    h = jnp.maximum(xn @ w1.T + b1, 0.0)
    y = h @ w2.T + b2
    return (x2 + y).reshape(B, T, C)


if __name__ == "__main__":
    key = jax.random.PRNGKey(0)

    def check(B, T, C, E, batch_norm):
        kx, kp = jax.random.split(jax.random.fold_in(key, B * 131 + T))
        x = jax.random.normal(kx, (B, T, C), jnp.float32)
        params = init_params(kp, C, E)
        out = jax.block_until_ready(
            mlp_feat_forward(x, *params, batch_norm=batch_norm))
        ref = _reference(x, *params, batch_norm=batch_norm)
        assert out.shape == (B, T, C)
        err = jnp.max(jnp.abs(out - ref))
        assert jnp.allclose(out, ref, atol=1e-4, rtol=1e-4), (
            f"mismatch (B={B}, T={T}, bn={batch_norm}): max_abs_err={err}")

    # small shape consistent with the module (batch=2, ts_length=8, C=4, E=32)
    check(2, 8, 4, 32, True)
    # larger N: multi-tile grid with a partial (masked) final block, no padding
    check(4, 700, 4, 32, True)
    # batch_norm=False constructor option
    check(2, 8, 4, 32, False)

    print("KERNEL_OK")
</pallas_src>

<mosaic_0001>
module attributes {stable_mosaic.version = 11 : i64} {
  func.func @_mlp_feat_kernel(%arg0: i32, %arg1: memref<4x16xf32, #tpu.memory_space<vmem>>, %arg2: memref<32x4xf32, #tpu.memory_space<vmem>>, %arg3: memref<32x1xf32, #tpu.memory_space<vmem>>, %arg4: memref<4x32xf32, #tpu.memory_space<vmem>>, %arg5: memref<4x1xf32, #tpu.memory_space<vmem>>, %arg6: memref<4x16xf32, #tpu.memory_space<vmem>>) attributes {dimension_semantics = [#tpu.dimension_semantics<parallel>], iteration_bounds = array<i64: 1>, scalar_prefetch = 0 : i64, scratch_operands = 0 : i64, tpu.core_type = #tpu.core_type<tc>, window_params = [{transform_indices = @transform_0, window_bounds = array<i64: 4, 16>}, {pipeline_mode = #tpu.pipeline_mode<synchronous>, transform_indices = @transform_1, window_bounds = array<i64: 32, 4>}, {pipeline_mode = #tpu.pipeline_mode<synchronous>, transform_indices = @transform_2, window_bounds = array<i64: 32, 1>}, {pipeline_mode = #tpu.pipeline_mode<synchronous>, transform_indices = @transform_3, window_bounds = array<i64: 4, 32>}, {pipeline_mode = #tpu.pipeline_mode<synchronous>, transform_indices = @transform_4, window_bounds = array<i64: 4, 1>}, {transform_indices = @transform_5, window_bounds = array<i64: 4, 16>}]} {
    %c0 = arith.constant 0 : index
    %c0_0 = arith.constant 0 : index
    %0 = vector.load %arg1[%c0, %c0_0] : memref<4x16xf32, #tpu.memory_space<vmem>>, vector<4x16xf32>
    %c0_1 = arith.constant 0 : index
    %c0_2 = arith.constant 0 : index
    %1 = vector.load %arg2[%c0_1, %c0_2] : memref<32x4xf32, #tpu.memory_space<vmem>>, vector<32x4xf32>
    %cst = arith.constant dense<0.000000e+00> : vector<32x16xf32>
    %2 = tpu.matmul %1, %0, %cst {dimension_numbers = #tpu.dot_dimension_numbers<[1], [0], [0], [1], [0, 0, 1, 1], [], []>} : vector<32x4xf32>, vector<4x16xf32>, vector<32x16xf32> -> vector<32x16xf32>
    %c0_3 = arith.constant 0 : index
    %c0_4 = arith.constant 0 : index
    %3 = vector.load %arg3[%c0_3, %c0_4] : memref<32x1xf32, #tpu.memory_space<vmem>>, vector<32x1xf32>
    %4 = vector.broadcast %3 : vector<32x1xf32> to vector<32x16xf32>
    %5 = arith.addf %2, %4 : vector<32x16xf32>
    %cst_5 = arith.constant 0.000000e+00 : f32
    %6 = vector.broadcast %cst_5 : f32 to vector<32x16xf32>
    %7 = arith.maximumf %5, %6 : vector<32x16xf32>
    %c0_6 = arith.constant 0 : index
    %c0_7 = arith.constant 0 : index
    %8 = vector.load %arg4[%c0_6, %c0_7] : memref<4x32xf32, #tpu.memory_space<vmem>>, vector<4x32xf32>
    %cst_8 = arith.constant dense<0.000000e+00> : vector<4x16xf32>
    %9 = tpu.matmul %8, %7, %cst_8 {dimension_numbers = #tpu.dot_dimension_numbers<[1], [0], [0], [1], [0, 0, 1, 1], [], []>} : vector<4x32xf32>, vector<32x16xf32>, vector<4x16xf32> -> vector<4x16xf32>
    %10 = arith.addf %0, %9 : vector<4x16xf32>
    %c0_9 = arith.constant 0 : index
    %c0_10 = arith.constant 0 : index
    %11 = vector.load %arg5[%c0_9, %c0_10] : memref<4x1xf32, #tpu.memory_space<vmem>>, vector<4x1xf32>
    %12 = vector.broadcast %11 : vector<4x1xf32> to vector<4x16xf32>
    %13 = arith.addf %10, %12 : vector<4x16xf32>
    %c0_11 = arith.constant 0 : index
    %c0_12 = arith.constant 0 : index
    %14 = vector.load %arg6[%c0_11, %c0_12] : memref<4x16xf32, #tpu.memory_space<vmem>>, vector<4x16xf32>
    tpu.vector_store %arg6[%c0_11, %c0_12], %13 {strides = array<i32>} : memref<4x16xf32, #tpu.memory_space<vmem>>, vector<4x16xf32>,
    return
  }
  func.func @transform_0(%arg0: i32) -> (i32, i32) {
    %c0_i32 = arith.constant 0 : i32
    %c0_i32_0 = arith.constant 0 : i32
    return %c0_i32, %arg0 : i32, i32
  }
  func.func @transform_1(%arg0: i32) -> (i32, i32) {
    %c0_i32 = arith.constant 0 : i32
    %c0_i32_0 = arith.constant 0 : i32
    %c0_i32_1 = arith.constant 0 : i32
    return %c0_i32, %c0_i32_0 : i32, i32
  }
  func.func @transform_2(%arg0: i32) -> (i32, i32) {
    %c0_i32 = arith.constant 0 : i32
    %c0_i32_0 = arith.constant 0 : i32
    %c0_i32_1 = arith.constant 0 : i32
    return %c0_i32, %c0_i32_0 : i32, i32
  }
  func.func @transform_3(%arg0: i32) -> (i32, i32) {
    %c0_i32 = arith.constant 0 : i32
    %c0_i32_0 = arith.constant 0 : i32
    %c0_i32_1 = arith.constant 0 : i32
    return %c0_i32, %c0_i32_0 : i32, i32
  }
  func.func @transform_4(%arg0: i32) -> (i32, i32) {
    %c0_i32 = arith.constant 0 : i32
    %c0_i32_0 = arith.constant 0 : i32
    %c0_i32_1 = arith.constant 0 : i32
    return %c0_i32, %c0_i32_0 : i32, i32
  }
  func.func @transform_5(%arg0: i32) -> (i32, i32) {
    %c0_i32 = arith.constant 0 : i32
    %c0_i32_0 = arith.constant 0 : i32
    return %c0_i32, %arg0 : i32, i32
  }
}

</mosaic_0001>

<llo_original>
// kernel: mlp_feat_forward.1
$region0: #{mlp_feat_forward.1}
  #allocation0 [shape = 'u32[]', space=smem, size = 0x4, offset = 0x4, fixed_abs, tag = 'smem constant byte address 0x4 - core index']
  #allocation1 [shape = 'u32[144,128]{1,0:T(1,128)}', space=vmem, size = 0x12000, scoped, tag = 'internal scratch']
  %s0 = inlined_call_operand.vmem [shape: f32[4,16], index: 0, kind: input, shape index: {}]
  %s1 = inlined_call_operand.vmem [shape: f32[32,4], index: 1, kind: input, shape index: {}]
  %s2 = inlined_call_operand.vmem [shape: f32[32,1], index: 2, kind: input, shape index: {}]
  %s3 = inlined_call_operand.vmem [shape: f32[4,32], index: 3, kind: input, shape index: {}]
  %s4 = inlined_call_operand.vmem [shape: f32[4,1], index: 4, kind: input, shape index: {}]
  %s5 = inlined_call_operand.vmem [shape: f32[4,16], index: 5, kind: output, shape index: {}]
  %s6 = sld [smem:[#allocation0]]
  $region30: #{mlp_feat_forward.1} parent=0
    _
  %s8 = ssub.s32 1, %s6
  %s9 = scalar_select 0, %s8, %s6
  // Predicated region
  $region2: #{mlp_feat_forward.1} parent=0 // pred_check
    _
  $region3: #{mlp_feat_forward.1} parent=0 // pred_check_branch
    %11 = sbr.rel (0) target = $region5
  $region4: #{mlp_feat_forward.1} parent=0 // pred_region
    _
  $region5: #{mlp_feat_forward.1} parent=0 // pred_fallthru
    _
  // Predicated region
  $region6: #{mlp_feat_forward.1} parent=0 // pred_check
    _
  $region7: #{mlp_feat_forward.1} parent=0 // pred_check_branch
    %13 = sbr.rel (0) target = $region9
  $region8: #{mlp_feat_forward.1} parent=0 // pred_region
    _
  $region9: #{mlp_feat_forward.1} parent=0 // pred_fallthru
    _
  // Predicated region
  $region10: #{mlp_feat_forward.1} parent=0 // pred_check
    _
  $region11: #{mlp_feat_forward.1} parent=0 // pred_check_branch
    %15 = sbr.rel (0) target = $region13
  $region12: #{mlp_feat_forward.1} parent=0 // pred_region
    _
  $region13: #{mlp_feat_forward.1} parent=0 // pred_fallthru
    _
  // Predicated region
  $region14: #{mlp_feat_forward.1} parent=0 // pred_check
    _
  $region15: #{mlp_feat_forward.1} parent=0 // pred_check_branch
    %17 = sbr.rel (0) target = $region17
  $region16: #{mlp_feat_forward.1} parent=0 // pred_region
    _
  $region17: #{mlp_feat_forward.1} parent=0 // pred_fallthru
    _
  // Predicated region
  $region18: #{mlp_feat_forward.1} parent=0 // pred_check
    _
  $region19: #{mlp_feat_forward.1} parent=0 // pred_check_branch
    %19 = sbr.rel (0) target = $region21
  $region20: #{mlp_feat_forward.1} parent=0 // pred_region
    _
  $region21: #{mlp_feat_forward.1} parent=0 // pred_fallthru
    _
  %v20 = vld [vmem:[%s0] sm:$0xf]
  %v21 = vld [vmem:[%s1] sm:$0xff]
  %v22 = vld [vmem:[%s1 + $0x8] sm:$0xff]
  %v23 = vld [vmem:[%s1 + $0x10] sm:$0xff]
  %v24 = vld [vmem:[%s1 + $0x18] sm:$0xff]
  %v25 = vld [vmem:[%s2] sm:$0xff]
  %v26 = vld [vmem:[%s2 + $0x8] sm:$0xff]
  %v27 = vld [vmem:[%s2 + $0x10] sm:$0xff]
  %v28 = vld [vmem:[%s2 + $0x18] sm:$0xff]
  %30 = vset.pattern.permute.xlu0 0
  %31 = vperm.xlu0 %30, %v25
  %v32 = vpop.permute.xlu0 %31
  %35 = vset.pattern.permute.xlu0 0
  %36 = vperm.xlu0 %35, %v26
  %v37 = vpop.permute.xlu0 %36
  %40 = vset.pattern.permute.xlu0 0
  %41 = vperm.xlu0 %40, %v27
  %v42 = vpop.permute.xlu0 %41
  %45 = vset.pattern.permute.xlu0 0
  %46 = vperm.xlu0 %45, %v28
  %v47 = vpop.permute.xlu0 %46
  %vm49 = vcmask 31744
  %v51 = vsel %vm49, %v21, 0
  %v54 = vsel %vm49, %v22, 0
  %v57 = vsel %vm49, %v23, 0
  %v60 = vsel %vm49, %v24, 0
  %vm62 = vcmask 1043456
  %v64 = vsel %vm62, %v20, 0
  %66 = vmatprep.subr.mxu0 0.0
  %67 = vmatpush1.msra.mxu0 0.0
  %68 = vmatprep.subr.mxu0 0.0
  %69 = vmatpush1.msra.mxu0 0.0
  %70 = vmatprep.subr.mxu0 0.0
  %71 = vmatpush1.msra.mxu0 0.0
  %72 = vmatprep.subr.mxu0 0.0
  %73 = vmatpush1.msra.mxu0 0.0
  %74 = vmatprep.subr.mxu0 0.0
  %75 = vmatpush1.msra.mxu0 0.0
  %76 = vmatprep.subr.mxu0 0.0
  %77 = vmatpush1.msra.mxu0 0.0
  %78 = vmatprep.subr.mxu0 0.0
  %79 = vmatpush1.msra.mxu0 0.0
  %80 = vmatprep.subr.mxu0 0.0
  %81 = vmatpush1.msra.mxu0 0.0
  %82 = vmatprep.subr.mxu0 0.0
  %83 = vmatpush1.msra.mxu0 0.0
  %84 = vmatprep.subr.mxu0 0.0
  %85 = vmatpush1.msra.mxu0 0.0
  %86 = vmatprep.subr.mxu0 0.0
  %87 = vmatpush1.msra.mxu0 0.0
  %88 = vmatprep.subr.mxu0 0.0
  %89 = vmatpush1.msra.mxu0 0.0
  %90 = vmatprep.subr.mxu0 0.0
  %91 = vmatpush1.msra.mxu0 0.0
  %92 = vmatprep.subr.mxu0 0.0
  %93 = vmatpush1.msra.mxu0 0.0
  %94 = vmatprep.subr.mxu0 0.0
  %95 = vmatpush1.msra.mxu0 0.0
  %96 = vmatprep.subr.mxu0 0.0
  %97 = vmatpush1.msra.mxu0 %v64
  %98 = vmatprep.subr.mxu0 0.0
  %99 = vmatpush2.msra.mxu0 0.0
  %100 = vmatprep.subr.mxu0 0.0
  %101 = vmatpush2.msra.mxu0 0.0
  %102 = vmatprep.subr.mxu0 0.0
  %103 = vmatpush2.msra.mxu0 0.0
  %104 = vmatprep.subr.mxu0 0.0
  %105 = vmatpush2.msra.mxu0 0.0
  %106 = vmatprep.subr.mxu0 0.0
  %107 = vmatpush2.msra.mxu0 0.0
  %108 = vmatprep.subr.mxu0 0.0
  %109 = vmatpush2.msra.mxu0 0.0
  %110 = vmatprep.subr.mxu0 0.0
  %111 = vmatpush2.msra.mxu0 0.0
  %112 = vmatprep.subr.mxu0 0.0
  %113 = vmatpush2.msra.mxu0 0.0
  %114 = vmatprep.subr.mxu0 0.0
  %115 = vmatpush2.msra.mxu0 0.0
  %116 = vmatprep.subr.mxu0 0.0
  %117 = vmatpush2.msra.mxu0 0.0
  %118 = vmatprep.subr.mxu0 0.0
  %119 = vmatpush2.msra.mxu0 0.0
  %120 = vmatprep.subr.mxu0 0.0
  %121 = vmatpush2.msra.mxu0 0.0
  %122 = vmatprep.subr.mxu0 0.0
  %123 = vmatpush2.msra.mxu0 0.0
  %124 = vmatprep.subr.mxu0 0.0
  %125 = vmatpush2.msra.mxu0 0.0
  %126 = vmatprep.subr.mxu0 0.0
  %127 = vmatpush2.msra.mxu0 0.0
  %128 = vmatprep.subr.mxu0 0.0
  %129 = vmatpush2.msra.mxu0 0.0
  %130 = vmatprep.mubr.f32.mxu0 0.0
  %131 = vmatmul.mubr.f32.gmra.mxu0 %v51
  %v132 = vpop.f32.mrf.mxu0
  %v133 = vadd.f32 %v32, %v132
  %v134 = vpop.f32.mrf.mxu0
  %135 = vmatprep.mubr.f32.mxu0 0.0
  %136 = vmatmul.mubr.f32.gmra.mxu0 %v54
  %v137 = vpop.f32.mrf.mxu0
  %v138 = vadd.f32 %v37, %v137
  %v139 = vpop.f32.mrf.mxu0
  %140 = vmatprep.mubr.f32.mxu0 0.0
  %141 = vmatmul.mubr.f32.gmra.mxu0 %v57
  %v142 = vpop.f32.mrf.mxu0
  %v143 = vadd.f32 %v42, %v142
  %v144 = vpop.f32.mrf.mxu0
  %145 = vmatprep.mubr.f32.mxu0 0.0
  %146 = vmatmul.mubr.f32.gmra.mxu0 %v60
  %v147 = vpop.f32.mrf.mxu0
  %v148 = vadd.f32 %v47, %v147
  %v149 = vpop.f32.mrf.mxu0
  %150 = vdwg.mxu0
  %v151 = vmax.f32 %v133, 0.0
  %v152 = vmax.f32 %v138, 0.0
  %v153 = vmax.f32 %v143, 0.0
  %v154 = vmax.f32 %v148, 0.0
  %v155 = vld [vmem:[%s3] sm:$0xf]
  %vm156 = vcmask 261120
  %v158 = vsel %vm156, %v155, 0
  %160 = vmatprep.subr.mxu0 0.0
  %161 = vmatpush1.msra.mxu0 0.0
  %162 = vmatprep.subr.mxu0 0.0
  %163 = vmatpush1.msra.mxu0 0.0
  %164 = vmatprep.subr.mxu0 0.0
  %165 = vmatpush1.msra.mxu0 0.0
  %166 = vmatprep.subr.mxu0 0.0
  %167 = vmatpush1.msra.mxu0 0.0
  %168 = vmatprep.subr.mxu0 0.0
  %169 = vmatpush1.msra.mxu0 0.0
  %170 = vmatprep.subr.mxu0 0.0
  %171 = vmatpush1.msra.mxu0 0.0
  %172 = vmatprep.subr.mxu0 0.0
  %173 = vmatpush1.msra.mxu0 0.0
  %174 = vmatprep.subr.mxu0 0.0
  %175 = vmatpush1.msra.mxu0 0.0
  %176 = vmatprep.subr.mxu0 0.0
  %177 = vmatpush1.msra.mxu0 0.0
  %178 = vmatprep.subr.mxu0 0.0
  %179 = vmatpush1.msra.mxu0 0.0
  %180 = vmatprep.subr.mxu0 0.0
  %181 = vmatpush1.msra.mxu0 0.0
  %182 = vmatprep.subr.mxu0 0.0
  %183 = vmatpush1.msra.mxu0 0.0
  %184 = vmatprep.subr.mxu0 0.0
  %185 = vmatpush1.msra.mxu0 %v154
  %186 = vmatprep.subr.mxu0 0.0
  %187 = vmatpush1.msra.mxu0 %v153
  %188 = vmatprep.subr.mxu0 0.0
  %189 = vmatpush1.msra.mxu0 %v152
  %190 = vmatprep.subr.mxu0 0.0
  %191 = vmatpush1.msra.mxu0 %v151
  %192 = vmatprep.subr.mxu0 0.0
  %193 = vmatpush2.msra.mxu0 0.0
  %194 = vmatprep.subr.mxu0 0.0
  %195 = vmatpush2.msra.mxu0 0.0
  %196 = vmatprep.subr.mxu0 0.0
  %197 = vmatpush2.msra.mxu0 0.0
  %198 = vmatprep.subr.mxu0 0.0
  %199 = vmatpush2.msra.mxu0 0.0
  %200 = vmatprep.subr.mxu0 0.0
  %201 = vmatpush2.msra.mxu0 0.0
  %202 = vmatprep.subr.mxu0 0.0
  %203 = vmatpush2.msra.mxu0 0.0
  %204 = vmatprep.subr.mxu0 0.0
  %205 = vmatpush2.msra.mxu0 0.0
  %206 = vmatprep.subr.mxu0 0.0
  %207 = vmatpush2.msra.mxu0 0.0
  %208 = vmatprep.subr.mxu0 0.0
  %209 = vmatpush2.msra.mxu0 0.0
  %210 = vmatprep.subr.mxu0 0.0
  %211 = vmatpush2.msra.mxu0 0.0
  %212 = vmatprep.subr.mxu0 0.0
  %213 = vmatpush2.msra.mxu0 0.0
  %214 = vmatprep.subr.mxu0 0.0
  %215 = vmatpush2.msra.mxu0 0.0
  %216 = vmatprep.subr.mxu0 0.0
  %217 = vmatpush2.msra.mxu0 0.0
  %218 = vmatprep.subr.mxu0 0.0
  %219 = vmatpush2.msra.mxu0 0.0
  %220 = vmatprep.subr.mxu0 0.0
  %221 = vmatpush2.msra.mxu0 0.0
  %222 = vmatprep.subr.mxu0 0.0
  %223 = vmatpush2.msra.mxu0 0.0
  %224 = vmatprep.mubr.f32.mxu0 0.0
  %225 = vmatmul.mubr.f32.gmra.mxu0 %v158
  %v226 = vpop.f32.mrf.mxu0
  %v227 = vadd.f32 0.0, %v226
  %v228 = vpop.f32.mrf.mxu0
  %229 = vdwg.mxu0
  %v230 = vadd.f32 %v20, %v227
  %v231 = vld [vmem:[%s4] sm:$0xf]
  %233 = vset.pattern.permute.xlu0 0
  %234 = vperm.xlu0 %233, %v231
  %v235 = vpop.permute.xlu0 %234
  %v237 = vadd.f32 %v230, %v235
  %vm238 = vcmask 125952
  %239 = vst.msk [vmem:[%s5] sm:$0xf] %vm238, %v237
  // Predicated region
  $region22: #{mlp_feat_forward.1} parent=0 // pred_check
    _
  $region23: #{mlp_feat_forward.1} parent=0 // pred_check_branch
    %241 = sbr.rel (0) target = $region25
  $region24: #{mlp_feat_forward.1} parent=0 // pred_region
    _
  $region25: #{mlp_feat_forward.1} parent=0 // pred_fallthru
    _
  // Predicated region
  $region26: #{mlp_feat_forward.1} parent=0 // pred_check
    _
  $region27: #{mlp_feat_forward.1} parent=0 // pred_check_branch
    %243 = sbr.rel (0) target = $region29
  $region28: #{mlp_feat_forward.1} parent=0 // pred_region
    _
  $region29: #{mlp_feat_forward.1} parent=0 // pred_fallthru
    _

</llo_original>
